<compile_context>
chip_gen: v5e
topology: v5e:2x2
jax: 0.10.0
libtpu: 0.0.40
codegen_flags: <defaults>
</compile_context>

<pallas_src>
import functools

import jax
import jax.numpy as jnp
from jax.experimental import pallas as pl
from jax.experimental.pallas import tpu as pltpu


def _round_up(x, m):
    return ((x + m - 1) // m) * m


def _regression_head_kernel(
    pts_ref,    # (1, 8, TN): rows 0-2 src xyz, 3-5 corres xyz, 6 ones, 7 zeros
    w_ref,      # (1, 1, TN): correspondence weights
    w1_ref, b1_ref, w2_ref, b2_ref, w3_ref, b3_ref,   # fused MLP params (VMEM resident)
    out_ref,    # (1, 1, 8): lanes 0-2 rotation, 3-5 translation, 6-7 pad
    acc_ref,    # (8, 128) f32 scratch; rows 0-5 weighted sums, row 6 sum_w (lane-broadcast)
):
    n = pl.program_id(1)

    @pl.when(n == 0)
    def _init():
        acc_ref[...] = jnp.zeros_like(acc_ref)

    # Hot path: lane-dense weighted partial sums over this tile of points.
    # (8, TN) * (1, TN) broadcast multiply on the VPU, lane reduce on the XLU;
    # the (8, 1) partial broadcasts across the accumulator's 128 lanes so the
    # finalize transpose below is the native full-vreg (8,128)->(128,8) op.
    acc_ref[...] += jnp.sum(pts_ref[0] * w_ref[0], axis=1, keepdims=True)

    @pl.when(n == pl.num_programs(1) - 1)
    def _finalize():
        acc_t = jnp.transpose(acc_ref[...])          # (128, 8); every row identical
        sums = acc_t[0:1, :]                         # (1, 8) unnormalized sums, lane-dense
        inv = 1.0 / (sums[0:1, 6:7] + 0.0001)        # (1, 1) deferred normalization
        x = sums * inv                               # lanes 6-7 hit zero rows of w1

        # Fused rot+trans MLP: relu(fc1) -> relu(fc2) -> fc3 on the MXU.
        h = jnp.dot(x, w1_ref[...], preferred_element_type=jnp.float32) + b1_ref[...]
        h = jnp.maximum(h, 0.0)
        h = jnp.dot(h, w2_ref[...], preferred_element_type=jnp.float32) + b2_ref[...]
        h = jnp.maximum(h, 0.0)
        y = jnp.dot(h, w3_ref[...], preferred_element_type=jnp.float32) + b3_ref[...]
        out_ref[...] = y[None].astype(out_ref.dtype)


def _pack_fused_params(params):
    """Fuse rot/trans branches into one block-diagonal MLP (torch weights are (out, in))."""
    f32 = jnp.float32
    # fc1: (6 -> 256), input zero-padded to 8 rows (rows 6-7 kill sum_w / pad lanes).
    w1 = jnp.concatenate([params["fc_rot1_w"], params["fc_trans1_w"]], axis=0)    # (256, 6)
    w1 = jnp.concatenate([w1, jnp.zeros((256, 2), f32)], axis=1).T                # (8, 256)
    b1 = jnp.concatenate([params["fc_rot1_b"], params["fc_trans1_b"]])[None, :]   # (1, 256)
    # fc2: block-diagonal (256 -> 128).
    w2 = jnp.zeros((256, 128), f32)
    w2 = w2.at[:128, :64].set(params["fc_rot2_w"].T)
    w2 = w2.at[128:, 64:].set(params["fc_trans2_w"].T)
    b2 = jnp.concatenate([params["fc_rot2_b"], params["fc_trans2_b"]])[None, :]   # (1, 128)
    # fc3: block-diagonal (128 -> 8); lanes 0-2 rot, 3-5 trans, 6-7 pad.
    w3 = jnp.zeros((128, 8), f32)
    w3 = w3.at[:64, :3].set(params["fc_rot3_w"].T)
    w3 = w3.at[64:, 3:6].set(params["fc_trans3_w"].T)
    b3 = jnp.zeros((1, 8), f32)
    b3 = b3.at[0, 0:3].set(params["fc_rot3_b"])
    b3 = b3.at[0, 3:6].set(params["fc_trans3_b"])
    return w1, b1, w2, b2, w3, b3


def regression_head(src, src_corres, weights, params, *, tile_n=2048):
    """src, src_corres: (B, N, 3); weights: (B, N) -> (rotation, translation), each (B, 3)."""
    B, N, _ = src.shape
    assert tile_n % 128 == 0

    # Lane-dense point layout: (B, 8, N) with N on the lane axis.
    pts = jnp.concatenate(
        [
            jnp.swapaxes(src, 1, 2),            # rows 0-2: src xyz
            jnp.swapaxes(src_corres, 1, 2),     # rows 3-5: corres xyz
            jnp.ones((B, 1, N), src.dtype),     # row 6: yields sum_w in the same reduce
            jnp.zeros((B, 1, N), src.dtype),    # row 7: pad to a full sublane group
        ],
        axis=1,
    )
    w = weights[:, None, :].astype(jnp.float32)  # (B, 1, N)

    # Pad the point axis to a multiple of the tile; zero weights contribute nothing.
    tn = min(tile_n, _round_up(N, 128))
    n_pad = _round_up(N, tn)
    if n_pad != N:
        pad = ((0, 0), (0, 0), (0, n_pad - N))
        pts = jnp.pad(pts, pad)
        w = jnp.pad(w, pad)

    w1, b1, w2, b2, w3, b3 = _pack_fused_params(params)
    const = lambda shape: pl.BlockSpec(shape, lambda b, n: (0, 0))

    out = pl.pallas_call(
        _regression_head_kernel,
        out_shape=jax.ShapeDtypeStruct((B, 1, 8), jnp.float32),
        grid_spec=pltpu.PrefetchScalarGridSpec(
            num_scalar_prefetch=0,
            grid=(B, n_pad // tn),
            in_specs=[
                pl.BlockSpec((1, 8, tn), lambda b, n: (b, 0, n)),
                pl.BlockSpec((1, 1, tn), lambda b, n: (b, 0, n)),
                const((8, 256)), const((1, 256)),
                const((256, 128)), const((1, 128)),
                const((128, 8)), const((1, 8)),
            ],
            out_specs=pl.BlockSpec((1, 1, 8), lambda b, n: (b, 0, 0)),
            scratch_shapes=[pltpu.VMEM((8, 128), jnp.float32)],
        ),
        compiler_params=pltpu.CompilerParams(
            dimension_semantics=("parallel", "arbitrary"),
        ),
    )(pts, w, w1, b1, w2, b2, w3, b3)

    return out[:, 0, 0:3], out[:, 0, 3:6]


def _reference(src, src_corres, weights, params):
    """Pure-JAX reference mirroring the PyTorch forward exactly."""
    sum_w = jnp.sum(weights, axis=1, keepdims=True) + 0.0001
    w = (weights / sum_w)[:, :, None]
    src_mean = jnp.sum(w * src, axis=1)
    corres_mean = jnp.sum(w * src_corres, axis=1)
    x = jnp.concatenate([src_mean, corres_mean], axis=1)

    def branch(p):
        h = jax.nn.relu(x @ params[f"{p}1_w"].T + params[f"{p}1_b"])
        h = jax.nn.relu(h @ params[f"{p}2_w"].T + params[f"{p}2_b"])
        return h @ params[f"{p}3_w"].T + params[f"{p}3_b"]

    return branch("fc_rot"), branch("fc_trans")


def _init_params(key):
    """Deterministic synthetic parameters matching nn.Linear shapes (out, in)."""
    shapes = {
        "fc_rot1_w": (128, 6), "fc_rot1_b": (128,),
        "fc_rot2_w": (64, 128), "fc_rot2_b": (64,),
        "fc_rot3_w": (3, 64), "fc_rot3_b": (3,),
        "fc_trans1_w": (128, 6), "fc_trans1_b": (128,),
        "fc_trans2_w": (64, 128), "fc_trans2_b": (64,),
        "fc_trans3_w": (3, 64), "fc_trans3_b": (3,),
    }
    params = {}
    keys = jax.random.split(key, len(shapes))
    for k, (name, shape) in zip(keys, sorted(shapes.items())):
        params[name] = jax.random.normal(k, shape, dtype=jnp.float32) * 0.1
    return params


if __name__ == "__main__":
    key = jax.random.PRNGKey(0)
    k_src, k_cor, k_w, k_p = jax.random.split(key, 4)

    B, N = 2, 500  # N not a multiple of 128: exercises the padded multi-tile path
    src = jax.random.normal(k_src, (B, N, 3), dtype=jnp.float32)
    src_corres = jax.random.normal(k_cor, (B, N, 3), dtype=jnp.float32)
    weights = jax.random.uniform(k_w, (B, N), dtype=jnp.float32)
    params = _init_params(k_p)

    fwd = jax.jit(functools.partial(regression_head, params=params, tile_n=128))
    rot, trans = fwd(src, src_corres, weights)
    jax.block_until_ready((rot, trans))

    rot_ref, trans_ref = _reference(src, src_corres, weights, params)
    assert rot.shape == (B, 3) and trans.shape == (B, 3)
    # Tolerance covers f32 summation-order differences between the tiled,
    # normalization-deferred reduction and the reference.
    assert jnp.allclose(rot, rot_ref, atol=1e-4, rtol=1e-4), float(jnp.max(jnp.abs(rot - rot_ref)))
    assert jnp.allclose(trans, trans_ref, atol=1e-4, rtol=1e-4), float(jnp.max(jnp.abs(trans - trans_ref)))

    print("KERNEL_OK")
</pallas_src>

<mosaic_0001>
module attributes {stable_mosaic.version = 11 : i64} {
  func.func @_regression_head_kernel(%arg0: i32, %arg1: i32, %arg2: memref<1x8x128xf32, #tpu.memory_space<vmem>>, %arg3: memref<1x1x128xf32, #tpu.memory_space<vmem>>, %arg4: memref<8x256xf32, #tpu.memory_space<vmem>>, %arg5: memref<1x256xf32, #tpu.memory_space<vmem>>, %arg6: memref<256x128xf32, #tpu.memory_space<vmem>>, %arg7: memref<1x128xf32, #tpu.memory_space<vmem>>, %arg8: memref<128x8xf32, #tpu.memory_space<vmem>>, %arg9: memref<1x8xf32, #tpu.memory_space<vmem>>, %arg10: memref<1x1x8xf32, #tpu.memory_space<vmem>>, %arg11: memref<8x128xf32, #tpu.memory_space<vmem>>) attributes {dimension_semantics = [#tpu.dimension_semantics<parallel>, #tpu.dimension_semantics<arbitrary>], iteration_bounds = array<i64: 2, 4>, scalar_prefetch = 0 : i64, scratch_operands = 1 : i64, tpu.core_type = #tpu.core_type<tc>, window_params = [{transform_indices = @transform_0, window_bounds = array<i64: 1, 8, 128>}, {transform_indices = @transform_1, window_bounds = array<i64: 1, 1, 128>}, {pipeline_mode = #tpu.pipeline_mode<synchronous>, transform_indices = @transform_2, window_bounds = array<i64: 8, 256>}, {pipeline_mode = #tpu.pipeline_mode<synchronous>, transform_indices = @transform_3, window_bounds = array<i64: 1, 256>}, {pipeline_mode = #tpu.pipeline_mode<synchronous>, transform_indices = @transform_4, window_bounds = array<i64: 256, 128>}, {pipeline_mode = #tpu.pipeline_mode<synchronous>, transform_indices = @transform_5, window_bounds = array<i64: 1, 128>}, {pipeline_mode = #tpu.pipeline_mode<synchronous>, transform_indices = @transform_6, window_bounds = array<i64: 128, 8>}, {pipeline_mode = #tpu.pipeline_mode<synchronous>, transform_indices = @transform_7, window_bounds = array<i64: 1, 8>}, {transform_indices = @transform_8, window_bounds = array<i64: 1, 1, 8>}]} {
    %c0_i32 = arith.constant 0 : i32
    %0 = arith.cmpi eq, %arg1, %c0_i32 : i32
    %1 = arith.extui %0 : i1 to i32
    %c0_i32_0 = arith.constant 0 : i32
    %2 = arith.cmpi ne, %1, %c0_i32_0 : i32
    scf.if %2 {
      %cst_11 = arith.constant 0.000000e+00 : f32
      %18 = vector.broadcast %cst_11 : f32 to vector<8x128xf32>
      %c0_12 = arith.constant 0 : index
      %c0_13 = arith.constant 0 : index
      %19 = vector.load %arg11[%c0_12, %c0_13] : memref<8x128xf32, #tpu.memory_space<vmem>>, vector<8x128xf32>
      tpu.vector_store %arg11[%c0_12, %c0_13], %18 {strides = array<i32>} : memref<8x128xf32, #tpu.memory_space<vmem>>, vector<8x128xf32>,
    } else {
    }
    %c0 = arith.constant 0 : index
    %c0_1 = arith.constant 0 : index
    %3 = vector.load %arg11[%c0, %c0_1] : memref<8x128xf32, #tpu.memory_space<vmem>>, vector<8x128xf32>
    %c0_2 = arith.constant 0 : index
    %c0_3 = arith.constant 0 : index
    %c0_4 = arith.constant 0 : index
    %4 = vector.load %arg2[%c0_2, %c0_3, %c0_4] : memref<1x8x128xf32, #tpu.memory_space<vmem>>, vector<1x8x128xf32>
    %5 = vector.shape_cast %4 : vector<1x8x128xf32> to vector<8x128xf32>
    %c0_5 = arith.constant 0 : index
    %c0_6 = arith.constant 0 : index
    %c0_7 = arith.constant 0 : index
    %6 = vector.load %arg3[%c0_5, %c0_6, %c0_7] : memref<1x1x128xf32, #tpu.memory_space<vmem>>, vector<1x1x128xf32>
    %7 = vector.shape_cast %6 : vector<1x1x128xf32> to vector<1x128xf32>
    %8 = vector.broadcast %7 : vector<1x128xf32> to vector<8x128xf32>
    %9 = arith.mulf %5, %8 : vector<8x128xf32>
    %cst = arith.constant dense<0.000000e+00> : vector<8xf32>
    %10 = vector.multi_reduction <add>, %9, %cst [1] : vector<8x128xf32> to vector<8xf32>
    %11 = vector.shape_cast %10 : vector<8xf32> to vector<8x1xf32>
    %12 = vector.broadcast %11 : vector<8x1xf32> to vector<8x128xf32>
    %13 = arith.addf %3, %12 : vector<8x128xf32>
    %c0_8 = arith.constant 0 : index
    %c0_9 = arith.constant 0 : index
    %14 = vector.load %arg11[%c0_8, %c0_9] : memref<8x128xf32, #tpu.memory_space<vmem>>, vector<8x128xf32>
    tpu.vector_store %arg11[%c0_8, %c0_9], %13 {strides = array<i32>} : memref<8x128xf32, #tpu.memory_space<vmem>>, vector<8x128xf32>,
    %c3_i32 = arith.constant 3 : i32
    %15 = arith.cmpi eq, %arg1, %c3_i32 : i32
    %16 = arith.extui %15 : i1 to i32
    %c0_i32_10 = arith.constant 0 : i32
    %17 = arith.cmpi ne, %16, %c0_i32_10 : i32
    scf.if %17 {
      %c0_11 = arith.constant 0 : index
      %c0_12 = arith.constant 0 : index
      %18 = vector.load %arg11[%c0_11, %c0_12] : memref<8x128xf32, #tpu.memory_space<vmem>>, vector<8x128xf32>
      %19 = tpu.transpose %18, [1, 0] : vector<8x128xf32> -> vector<128x8xf32>
      %20 = vector.extract_strided_slice %19 {offsets = [0, 0], sizes = [1, 8], strides = [1, 1]} : vector<128x8xf32> to vector<1x8xf32>
      %21 = vector.extract_strided_slice %20 {offsets = [0, 6], sizes = [1, 1], strides = [1, 1]} : vector<1x8xf32> to vector<1x1xf32>
      %cst_13 = arith.constant 9.99999974E-5 : f32
      %22 = vector.broadcast %cst_13 : f32 to vector<1x1xf32>
      %23 = arith.addf %21, %22 : vector<1x1xf32>
      %cst_14 = arith.constant 1.000000e+00 : f32
      %24 = vector.broadcast %cst_14 : f32 to vector<1x1xf32>
      %25 = arith.divf %24, %23 : vector<1x1xf32>
      %26 = vector.broadcast %25 : vector<1x1xf32> to vector<1x8xf32>
      %27 = arith.mulf %20, %26 : vector<1x8xf32>
      %c0_15 = arith.constant 0 : index
      %c0_16 = arith.constant 0 : index
      %28 = vector.load %arg4[%c0_15, %c0_16] : memref<8x256xf32, #tpu.memory_space<vmem>>, vector<8x256xf32>
      %cst_17 = arith.constant dense<0.000000e+00> : vector<1x256xf32>
      %29 = tpu.matmul %27, %28, %cst_17 {dimension_numbers = #tpu.dot_dimension_numbers<[1], [0], [0], [1], [0, 0, 1, 1], [], []>} : vector<1x8xf32>, vector<8x256xf32>, vector<1x256xf32> -> vector<1x256xf32>
      %c0_18 = arith.constant 0 : index
      %c0_19 = arith.constant 0 : index
      %30 = vector.load %arg5[%c0_18, %c0_19] : memref<1x256xf32, #tpu.memory_space<vmem>>, vector<1x256xf32>
      %31 = arith.addf %29, %30 : vector<1x256xf32>
      %cst_20 = arith.constant 0.000000e+00 : f32
      %32 = vector.broadcast %cst_20 : f32 to vector<1x256xf32>
      %33 = arith.maximumf %31, %32 : vector<1x256xf32>
      %c0_21 = arith.constant 0 : index
      %c0_22 = arith.constant 0 : index
      %34 = vector.load %arg6[%c0_21, %c0_22] : memref<256x128xf32, #tpu.memory_space<vmem>>, vector<256x128xf32>
      %cst_23 = arith.constant dense<0.000000e+00> : vector<1x128xf32>
      %35 = tpu.matmul %33, %34, %cst_23 {dimension_numbers = #tpu.dot_dimension_numbers<[1], [0], [0], [1], [0, 0, 1, 1], [], []>} : vector<1x256xf32>, vector<256x128xf32>, vector<1x128xf32> -> vector<1x128xf32>
      %c0_24 = arith.constant 0 : index
      %c0_25 = arith.constant 0 : index
      %36 = vector.load %arg7[%c0_24, %c0_25] : memref<1x128xf32, #tpu.memory_space<vmem>>, vector<1x128xf32>
      %37 = arith.addf %35, %36 : vector<1x128xf32>
      %cst_26 = arith.constant 0.000000e+00 : f32
      %38 = vector.broadcast %cst_26 : f32 to vector<1x128xf32>
      %39 = arith.maximumf %37, %38 : vector<1x128xf32>
      %c0_27 = arith.constant 0 : index
      %c0_28 = arith.constant 0 : index
      %40 = vector.load %arg8[%c0_27, %c0_28] : memref<128x8xf32, #tpu.memory_space<vmem>>, vector<128x8xf32>
      %cst_29 = arith.constant dense<0.000000e+00> : vector<1x8xf32>
      %41 = tpu.matmul %39, %40, %cst_29 {dimension_numbers = #tpu.dot_dimension_numbers<[1], [0], [0], [1], [0, 0, 1, 1], [], []>} : vector<1x128xf32>, vector<128x8xf32>, vector<1x8xf32> -> vector<1x8xf32>
      %c0_30 = arith.constant 0 : index
      %c0_31 = arith.constant 0 : index
      %42 = vector.load %arg9[%c0_30, %c0_31] : memref<1x8xf32, #tpu.memory_space<vmem>>, vector<1x8xf32>
      %43 = arith.addf %41, %42 : vector<1x8xf32>
      %44 = vector.shape_cast %43 : vector<1x8xf32> to vector<1x1x8xf32>
      %c0_32 = arith.constant 0 : index
      %c0_33 = arith.constant 0 : index
      %c0_34 = arith.constant 0 : index
      %45 = vector.load %arg10[%c0_32, %c0_33, %c0_34] : memref<1x1x8xf32, #tpu.memory_space<vmem>>, vector<1x1x8xf32>
      tpu.vector_store %arg10[%c0_32, %c0_33, %c0_34], %44 {strides = array<i32>} : memref<1x1x8xf32, #tpu.memory_space<vmem>>, vector<1x1x8xf32>,
    } else {
    }
    return
  }
  func.func @transform_0(%arg0: i32, %arg1: i32) -> (i32, i32, i32) {
    %c0_i32 = arith.constant 0 : i32
    %c0_i32_0 = arith.constant 0 : i32
    return %arg0, %c0_i32, %arg1 : i32, i32, i32
  }
  func.func @transform_1(%arg0: i32, %arg1: i32) -> (i32, i32, i32) {
    %c0_i32 = arith.constant 0 : i32
    %c0_i32_0 = arith.constant 0 : i32
    return %arg0, %c0_i32, %arg1 : i32, i32, i32
  }
  func.func @transform_2(%arg0: i32, %arg1: i32) -> (i32, i32) {
    %c0_i32 = arith.constant 0 : i32
    %c0_i32_0 = arith.constant 0 : i32
    %c0_i32_1 = arith.constant 0 : i32
    return %c0_i32, %c0_i32_0 : i32, i32
  }
  func.func @transform_3(%arg0: i32, %arg1: i32) -> (i32, i32) {
    %c0_i32 = arith.constant 0 : i32
    %c0_i32_0 = arith.constant 0 : i32
    %c0_i32_1 = arith.constant 0 : i32
    return %c0_i32, %c0_i32_0 : i32, i32
  }
  func.func @transform_4(%arg0: i32, %arg1: i32) -> (i32, i32) {
    %c0_i32 = arith.constant 0 : i32
    %c0_i32_0 = arith.constant 0 : i32
    %c0_i32_1 = arith.constant 0 : i32
    return %c0_i32, %c0_i32_0 : i32, i32
  }
  func.func @transform_5(%arg0: i32, %arg1: i32) -> (i32, i32) {
    %c0_i32 = arith.constant 0 : i32
    %c0_i32_0 = arith.constant 0 : i32
    %c0_i32_1 = arith.constant 0 : i32
    return %c0_i32, %c0_i32_0 : i32, i32
  }
  func.func @transform_6(%arg0: i32, %arg1: i32) -> (i32, i32) {
    %c0_i32 = arith.constant 0 : i32
    %c0_i32_0 = arith.constant 0 : i32
    %c0_i32_1 = arith.constant 0 : i32
    return %c0_i32, %c0_i32_0 : i32, i32
  }
  func.func @transform_7(%arg0: i32, %arg1: i32) -> (i32, i32) {
    %c0_i32 = arith.constant 0 : i32
    %c0_i32_0 = arith.constant 0 : i32
    %c0_i32_1 = arith.constant 0 : i32
    return %c0_i32, %c0_i32_0 : i32, i32
  }
  func.func @transform_8(%arg0: i32, %arg1: i32) -> (i32, i32, i32) {
    %c0_i32 = arith.constant 0 : i32
    %c0_i32_0 = arith.constant 0 : i32
    %c0_i32_1 = arith.constant 0 : i32
    return %arg0, %c0_i32, %c0_i32_0 : i32, i32, i32
  }
}

</mosaic_0001>

<llo_original>
// kernel: regression_head.1
$region0: #{regression_head.1}
  #allocation0 [shape = 'u32[]', space=smem, size = 0x4, offset = 0x4, fixed_abs, tag = 'smem constant byte address 0x4 - core index']
  #allocation1 [shape = 'u32[72,128]{1,0:T(1,128)}', space=vmem, size = 0x9000, scoped, tag = 'internal scratch']
  #allocation2 [shape = 'f32[8,128]{1,0:T(8,128)}', space=vmem, size = 0x1000, scoped, tag = 'scratch operand']
  %s0 = inlined_call_operand.vmem [shape: f32[2,8,512], index: 0, kind: input, shape index: {}]
  %s1 = inlined_call_operand.vmem [shape: f32[2,1,512], index: 1, kind: input, shape index: {}]
  %s2 = inlined_call_operand.vmem [shape: f32[8,256], index: 2, kind: input, shape index: {}]
  %s3 = inlined_call_operand.vmem [shape: f32[1,256], index: 3, kind: input, shape index: {}]
  %s4 = inlined_call_operand.vmem [shape: f32[256,128], index: 4, kind: input, shape index: {}]
  %s5 = inlined_call_operand.vmem [shape: f32[1,128], index: 5, kind: input, shape index: {}]
  %s6 = inlined_call_operand.hbm [shape: f32[128,8], index: 6, kind: input, shape index: {}]
  %s7 = inlined_call_operand.vmem [shape: f32[1,8], index: 7, kind: input, shape index: {}]
  %s8 = inlined_call_operand.vmem [shape: f32[2,1,8], index: 8, kind: output, shape index: {}]
  %s9 = sld [smem:[#allocation0]]
  $region77: #{regression_head.1} parent=0
    _
  %s11 = ssub.s32 1, %s9
  %s12 = scalar_select 0, %s11, %s9
  $region1: #{regression_head.1} parent=0
    #allocation3 [shape = 'u8[65536]{0}', space=vmem, size = 0x10000, scoped, tag = 'input window, operand 6, single buffered']
    #allocation4 [shape = 's32[2]{0}', space=sflag, size = 0x8, scoped, tag = 'scoped memory for regression_head.1']
    %13 = vsyncpa [#allocation4], 0
    loop: start=0, step=1, limit=10
    $region2: #{regression_head.1} parent=1 // loop_pre_header
      _
    $region3: #{regression_head.1} parent=1 // loop_header
      %s15 = sphi 0, %s19
      %p16 = scmp.ge.s32.totalorder %s15, 10
      %s22 = sphi 0, %s34
      %s23 = sphi 0, %s30
      %s24 = sphi 0, %s22
      %s25 = sphi 0, %s23
      %s26 = sphi 0, %s24
      %s27 = sphi 0, %s25
      %s39 = sphi 0, %s41
      %s42 = sphi 0, %s39
      %s43 = sphi 0, %s42
      %s59 = sphi 0, %s43
      %s67 = sphi 0, %s69
      %s70 = sphi 0, %s67
      %s71 = sphi 0, %s70
      %s87 = sphi 0, %s71
      %s91 = sphi 0, %s91
      %s93 = sphi 0, %s91
      %s94 = sphi 0, %s93
      %s108 = sphi 0, %s94
      %s112 = sphi 0, %s112
      %s114 = sphi 0, %s112
      %s115 = sphi 0, %s114
      %s129 = sphi 0, %s115
      %s133 = sphi 0, %s133
      %s135 = sphi 0, %s133
      %s136 = sphi 0, %s135
      %s150 = sphi 0, %s136
      %s154 = sphi 0, %s154
      %s156 = sphi 0, %s154
      %s157 = sphi 0, %s156
      %s171 = sphi 0, %s157
      %s175 = sphi 0, %s175
      %s177 = sphi 0, %s175
      %s178 = sphi 0, %s177
      %s192 = sphi 0, %s178
      %s196 = sphi 0, %s196
      %s198 = sphi 0, %s196
      %s199 = sphi 0, %s198
      %s213 = sphi 0, %s199
      %s219 = sphi 0, %s221
      %s222 = sphi 0, %s219
      %s223 = sphi 0, %s222
      %s239 = sphi 0, %s223
    $region4: #{regression_head.1} parent=1 // loop_header_branch
      %18 = sbr.rel (%p16) target = $region8
    $region5: #{regression_head.1} parent=1 // loop_body
      %s20 = ssub.s32 %s15, 1
      %s21 = ssub.s32 %s15, 2
      %s28 = sadd.s32 1, %s23
      %p29 = scmp.ge.s32.totalorder %s28, 4
      %s30 = scalar_select %p29, 0, %s28
      %s31 = sadd.s32 1, %s22
      %s32 = scalar_select %p29, %s31, %s22
      %p33 = scmp.ge.s32.totalorder %s32, 2
      %s34 = scalar_select %p33, 0, %s32
      %s35 = ssub.s32 %s22, %s34
      %s36 = ssub.s32 %s23, %s30
      %s37 = sor.u32 %s35, %s36
      %p38 = scmp.eq.s32.totalorder %s37, 0
      %s40 = sadd.s32 %s39, 1
      %s41 = scalar_select %p38, %s39, %s40
      %p44 = pneg %p38
      %p45 = scmp.eq.s32.totalorder %s15, 7
      %p46 = por %p44, %p45
      %p47 = scmp.ne.s32.totalorder %s39, %s42
      %p48 = scmp.eq.s32.totalorder %s15, 0
      %p49 = por %p47, %p48
      %p50 = scmp.ne.s32.totalorder %s39, %s42
      %p51 = scmp.eq.s32.totalorder %s20, 7
      %p52 = por %p50, %p51
      %p53 = scmp.ne.s32.totalorder %s42, %s43
      %p54 = scmp.eq.s32.totalorder %s20, 0
      %p55 = por %p53, %p54
      %p56 = scmp.ne.s32.totalorder %s42, %s43
      %p57 = scmp.eq.s32.totalorder %s21, 7
      %p58 = por %p56, %p57
      %p60 = scmp.ne.s32.totalorder %s43, %s59
      %p61 = scmp.eq.s32.totalorder %s21, 0
      %p62 = por %p60, %p61
      %s63 = ssub.s32 %s22, %s34
      %s64 = ssub.s32 %s23, %s30
      %s65 = sor.u32 %s63, %s64
      %p66 = scmp.eq.s32.totalorder %s65, 0
      %s68 = sadd.s32 %s67, 1
      %s69 = scalar_select %p66, %s67, %s68
      %p72 = pneg %p66
      %p73 = scmp.eq.s32.totalorder %s15, 7
      %p74 = por %p72, %p73
      %p75 = scmp.ne.s32.totalorder %s67, %s70
      %p76 = scmp.eq.s32.totalorder %s15, 0
      %p77 = por %p75, %p76
      %p78 = scmp.ne.s32.totalorder %s67, %s70
      %p79 = scmp.eq.s32.totalorder %s20, 7
      %p80 = por %p78, %p79
      %p81 = scmp.ne.s32.totalorder %s70, %s71
      %p82 = scmp.eq.s32.totalorder %s20, 0
      %p83 = por %p81, %p82
      %p84 = scmp.ne.s32.totalorder %s70, %s71
      %p85 = scmp.eq.s32.totalorder %s21, 7
      %p86 = por %p84, %p85
      %p88 = scmp.ne.s32.totalorder %s71, %s87
      %p89 = scmp.eq.s32.totalorder %s21, 0
      %p90 = por %p88, %p89
      %s92 = sadd.s32 %s91, 1
      %p95 = scmp.eq.s32.totalorder %s15, 7
      %p96 = scmp.ne.s32.totalorder %s91, %s93
      %p97 = scmp.eq.s32.totalorder %s15, 0
      %p98 = por %p96, %p97
      %p99 = scmp.ne.s32.totalorder %s91, %s93
      %p100 = scmp.eq.s32.totalorder %s20, 7
      %p101 = por %p99, %p100
      %p102 = scmp.ne.s32.totalorder %s93, %s94
      %p103 = scmp.eq.s32.totalorder %s20, 0
      %p104 = por %p102, %p103
      %p105 = scmp.ne.s32.totalorder %s93, %s94
      %p106 = scmp.eq.s32.totalorder %s21, 7
      %p107 = por %p105, %p106
      %p109 = scmp.ne.s32.totalorder %s94, %s108
      %p110 = scmp.eq.s32.totalorder %s21, 0
      %p111 = por %p109, %p110
      %s113 = sadd.s32 %s112, 1
      %p116 = scmp.eq.s32.totalorder %s15, 7
      %p117 = scmp.ne.s32.totalorder %s112, %s114
      %p118 = scmp.eq.s32.totalorder %s15, 0
      %p119 = por %p117, %p118
      %p120 = scmp.ne.s32.totalorder %s112, %s114
      %p121 = scmp.eq.s32.totalorder %s20, 7
      %p122 = por %p120, %p121
      %p123 = scmp.ne.s32.totalorder %s114, %s115
      %p124 = scmp.eq.s32.totalorder %s20, 0
      %p125 = por %p123, %p124
      %p126 = scmp.ne.s32.totalorder %s114, %s115
      %p127 = scmp.eq.s32.totalorder %s21, 7
      %p128 = por %p126, %p127
      %p130 = scmp.ne.s32.totalorder %s115, %s129
      %p131 = scmp.eq.s32.totalorder %s21, 0
      %p132 = por %p130, %p131
      %s134 = sadd.s32 %s133, 1
      %p137 = scmp.eq.s32.totalorder %s15, 7
      %p138 = scmp.ne.s32.totalorder %s133, %s135
      %p139 = scmp.eq.s32.totalorder %s15, 0
      %p140 = por %p138, %p139
      %p141 = scmp.ne.s32.totalorder %s133, %s135
      %p142 = scmp.eq.s32.totalorder %s20, 7
      %p143 = por %p141, %p142
      %p144 = scmp.ne.s32.totalorder %s135, %s136
      %p145 = scmp.eq.s32.totalorder %s20, 0
      %p146 = por %p144, %p145
      %p147 = scmp.ne.s32.totalorder %s135, %s136
      %p148 = scmp.eq.s32.totalorder %s21, 7
      %p149 = por %p147, %p148
      %p151 = scmp.ne.s32.totalorder %s136, %s150
      %p152 = scmp.eq.s32.totalorder %s21, 0
      %p153 = por %p151, %p152
      %s155 = sadd.s32 %s154, 1
      %p158 = scmp.eq.s32.totalorder %s15, 7
      %p159 = scmp.ne.s32.totalorder %s154, %s156
      %p160 = scmp.eq.s32.totalorder %s15, 0
      %p161 = por %p159, %p160
      %p162 = scmp.ne.s32.totalorder %s154, %s156
      %p163 = scmp.eq.s32.totalorder %s20, 7
      %p164 = por %p162, %p163
      %p165 = scmp.ne.s32.totalorder %s156, %s157
      %p166 = scmp.eq.s32.totalorder %s20, 0
      %p167 = por %p165, %p166
      %p168 = scmp.ne.s32.totalorder %s156, %s157
      %p169 = scmp.eq.s32.totalorder %s21, 7
      %p170 = por %p168, %p169
      %p172 = scmp.ne.s32.totalorder %s157, %s171
      %p173 = scmp.eq.s32.totalorder %s21, 0
      %p174 = por %p172, %p173
      %s176 = sadd.s32 %s175, 1
      %p179 = scmp.eq.s32.totalorder %s15, 7
      %p180 = scmp.ne.s32.totalorder %s175, %s177
      %p181 = scmp.eq.s32.totalorder %s15, 0
      %p182 = por %p180, %p181
      %p183 = scmp.ne.s32.totalorder %s175, %s177
      %p184 = scmp.eq.s32.totalorder %s20, 7
      %p185 = por %p183, %p184
      %p186 = scmp.ne.s32.totalorder %s177, %s178
      %p187 = scmp.eq.s32.totalorder %s20, 0
      %p188 = por %p186, %p187
      %p189 = scmp.ne.s32.totalorder %s177, %s178
      %p190 = scmp.eq.s32.totalorder %s21, 7
      %p191 = por %p189, %p190
      %p193 = scmp.ne.s32.totalorder %s178, %s192
      %p194 = scmp.eq.s32.totalorder %s21, 0
      %p195 = por %p193, %p194
      %s197 = sadd.s32 %s196, 1
      %p200 = scmp.eq.s32.totalorder %s15, 7
      %p201 = scmp.ne.s32.totalorder %s196, %s198
      %p202 = scmp.eq.s32.totalorder %s15, 0
      %p203 = por %p201, %p202
      %p204 = scmp.ne.s32.totalorder %s196, %s198
      %p205 = scmp.eq.s32.totalorder %s20, 7
      %p206 = por %p204, %p205
      %p207 = scmp.ne.s32.totalorder %s198, %s199
      %p208 = scmp.eq.s32.totalorder %s20, 0
      %p209 = por %p207, %p208
      %p210 = scmp.ne.s32.totalorder %s198, %s199
      %p211 = scmp.eq.s32.totalorder %s21, 7
      %p212 = por %p210, %p211
      %p214 = scmp.ne.s32.totalorder %s199, %s213
      %p215 = scmp.eq.s32.totalorder %s21, 0
      %p216 = por %p214, %p215
      %s217 = ssub.s32 %s22, %s34
      %p218 = scmp.eq.s32.totalorder %s217, 0
      %s220 = sadd.s32 %s219, 1
      %s221 = scalar_select %p218, %s219, %s220
      %p224 = pneg %p218
      %p225 = scmp.eq.s32.totalorder %s15, 7
      %p226 = por %p224, %p225
      %p227 = scmp.ne.s32.totalorder %s219, %s222
      %p228 = scmp.eq.s32.totalorder %s15, 0
      %p229 = por %p227, %p228
      %p230 = scmp.ne.s32.totalorder %s219, %s222
      %p231 = scmp.eq.s32.totalorder %s20, 7
      %p232 = por %p230, %p231
      %p233 = scmp.ne.s32.totalorder %s222, %s223
      %p234 = scmp.eq.s32.totalorder %s20, 0
      %p235 = por %p233, %p234
      %p236 = scmp.ne.s32.totalorder %s222, %s223
      %p237 = scmp.eq.s32.totalorder %s21, 7
      %p238 = por %p236, %p237
      %p240 = scmp.ne.s32.totalorder %s223, %s239
      %p241 = scmp.eq.s32.totalorder %s21, 0
      %p242 = por %p240, %p241
      %p243 = scmp.le.s32.totalorder 1, %s15
      %p244 = scmp.lt.s32.totalorder %s15, 9
      %p245 = pnand %p243, %p244
      %p246 = pneg %p245
      // Predicated region
      $region9: #{regression_head.1} parent=5 // pred_check
        _
      $region10: #{regression_head.1} parent=5 // pred_check_branch
        %248 = sbr.rel (%p245) target = $region12
      $region11: #{regression_head.1} parent=5 // pred_region
        %s249 = ssub.s32 %s15, 1
        // Predicated region
        $region13: #{regression_head.1} parent=11 // pred_check
          %p250 = pneg %p104
        $region14: #{regression_head.1} parent=11 // pred_check_branch
          %252 = sbr.rel (%p250) target = $region16
        $region15: #{regression_head.1} parent=11 // pred_region
          _
        $region16: #{regression_head.1} parent=11 // pred_fallthru
          _
        // Predicated region
        $region17: #{regression_head.1} parent=11 // pred_check
          %p253 = pneg %p125
        $region18: #{regression_head.1} parent=11 // pred_check_branch
          %255 = sbr.rel (%p253) target = $region20
        $region19: #{regression_head.1} parent=11 // pred_region
          _
        $region20: #{regression_head.1} parent=11 // pred_fallthru
          _
        // Predicated region
        $region21: #{regression_head.1} parent=11 // pred_check
          %p256 = pneg %p146
        $region22: #{regression_head.1} parent=11 // pred_check_branch
          %258 = sbr.rel (%p256) target = $region24
        $region23: #{regression_head.1} parent=11 // pred_region
          _
        $region24: #{regression_head.1} parent=11 // pred_fallthru
          _
        // Predicated region
        $region25: #{regression_head.1} parent=11 // pred_check
          %p259 = pneg %p167
        $region26: #{regression_head.1} parent=11 // pred_check_branch
          %261 = sbr.rel (%p259) target = $region28
        $region27: #{regression_head.1} parent=11 // pred_region
          _
        $region28: #{regression_head.1} parent=11 // pred_fallthru
          _
        // Predicated region
        $region29: #{regression_head.1} parent=11 // pred_check
          %p262 = pneg %p188
        $region30: #{regression_head.1} parent=11 // pred_check_branch
          %264 = sbr.rel (%p262) target = $region32
        $region31: #{regression_head.1} parent=11 // pred_region
          %266 = vsyncadd [#allocation4], 0
          %s267 = sshll.u32 %s6, 4
          %s268 = int_to_ptr.hbm [resolvable:$true] %s267
          %s269 = sshll.u32 [#allocation3], 4
          %s270 = int_to_ptr.vmem [resolvable:$true] %s269
          %275 = dma.hbm_to_vmem [thread:$0]  %s268, 2048, %s270, [#allocation4], 128, 128, 8
        $region32: #{regression_head.1} parent=11 // pred_fallthru
          _
        // Predicated region
        $region33: #{regression_head.1} parent=11 // pred_check
          %p276 = pneg %p209
        $region34: #{regression_head.1} parent=11 // pred_check_branch
          %278 = sbr.rel (%p276) target = $region36
        $region35: #{regression_head.1} parent=11 // pred_region
          _
        $region36: #{regression_head.1} parent=11 // pred_fallthru
          _
      $region12: #{regression_head.1} parent=5 // pred_fallthru
        _
      %p279 = scmp.lt.s32.totalorder %s15, 8
      // Predicated region
      $region37: #{regression_head.1} parent=5 // pred_check
        %p280 = pneg %p279
      $region38: #{regression_head.1} parent=5 // pred_check_branch
        %282 = sbr.rel (%p280) target = $region40
      $region39: #{regression_head.1} parent=5 // pred_region
        // Predicated region
        $region41: #{regression_head.1} parent=39 // pred_check
          %p283 = pneg %p49
        $region42: #{regression_head.1} parent=39 // pred_check_branch
          %285 = sbr.rel (%p283) target = $region44
        $region43: #{regression_head.1} parent=39 // pred_region
          %p286 = scmp.lt.s32.totalorder %s22, 1
          %s287 = scalar_select %p286, %s22, 1
          %p288 = scmp.lt.s32.totalorder %s23, 3
          %s289 = scalar_select %p288, %s23, 3
          %s290 = smul.addr %s287, 4
          %s291 = sadd.s32 %s289, %s290
          %s292 = smul.addr %s291, 8
          %s293 = scalar_lea.vmem %s0, %s292
        $region44: #{regression_head.1} parent=39 // pred_fallthru
          _
        // Predicated region
        $region45: #{regression_head.1} parent=39 // pred_check
          %p294 = pneg %p77
        $region46: #{regression_head.1} parent=39 // pred_check_branch
          %296 = sbr.rel (%p294) target = $region48
        $region47: #{regression_head.1} parent=39 // pred_region
          %p297 = scmp.lt.s32.totalorder %s22, 1
          %s298 = scalar_select %p297, %s22, 1
          %p299 = scmp.lt.s32.totalorder %s23, 3
          %s300 = scalar_select %p299, %s23, 3
          %s301 = smul.addr %s298, 4
          %s302 = sadd.s32 %s300, %s301
          %s303 = scalar_lea.vmem %s1, %s302
        $region48: #{regression_head.1} parent=39 // pred_fallthru
          _
      $region40: #{regression_head.1} parent=5 // pred_fallthru
        _
      %p304 = scmp.le.s32.totalorder 1, %s15
      %p305 = scmp.lt.s32.totalorder %s15, 9
      %p306 = pnand %p304, %p305
      %p307 = pneg %p306
      // Predicated region
      $region49: #{regression_head.1} parent=5 // pred_check
        _
      $region50: #{regression_head.1} parent=5 // pred_check_branch
        %309 = sbr.rel (%p306) target = $region52
      $region51: #{regression_head.1} parent=5 // pred_region
        %s310 = ssub.s32 %s15, 1
        // Predicated region
        $region53: #{regression_head.1} parent=51 // pred_check
          %p311 = pneg %p188
        $region54: #{regression_head.1} parent=51 // pred_check_branch
          %313 = sbr.rel (%p311) target = $region56
        $region55: #{regression_head.1} parent=51 // pred_region
          %315 = dma.done [#allocation4], 2048
        $region56: #{regression_head.1} parent=51 // pred_fallthru
          _
        %p316 = scmp.lt.s32.totalorder %s24, 1
        %s317 = scalar_select %p316, %s24, 1
        %p318 = scmp.lt.s32.totalorder %s25, 3
        %s319 = scalar_select %p318, %s25, 3
        %s320 = smul.addr %s317, 4
        %s321 = sadd.s32 %s319, %s320
        %s322 = smul.addr %s321, 8
        %s323 = scalar_lea.vmem %s0, %s322
        %p324 = pneg %p55
        %p325 = pneg %p52
        %p326 = scmp.lt.s32.totalorder %s24, 1
        %s327 = scalar_select %p326, %s24, 1
        %p328 = scmp.lt.s32.totalorder %s25, 3
        %s329 = scalar_select %p328, %s25, 3
        %s330 = smul.addr %s327, 4
        %s331 = sadd.s32 %s329, %s330
        %s332 = scalar_lea.vmem %s1, %s331
        %p333 = pneg %p83
        %p334 = pneg %p80
        %p335 = pneg %p104
        %p336 = pneg %p101
        %p337 = pneg %p125
        %p338 = pneg %p122
        %p339 = pneg %p146
        %p340 = pneg %p143
        %p341 = pneg %p167
        %p342 = pneg %p164
        %p343 = pneg %p188
        %p344 = pneg %p185
        %p345 = pneg %p209
        %p346 = pneg %p206
        %p347 = pneg %p235
        %p348 = pneg %p232
        %p349 = scmp.lt.s32.totalorder %s24, 1
        %s350 = scalar_select %p349, %s24, 1
        %s351 = scalar_lea.vmem %s8, %s350
        %p352 = scmp.lt.s32.totalorder %s24, 1
        %s353 = scalar_select %p352, %s24, 1
        %p354 = scmp.lt.s32.totalorder %s25, 3
        %s355 = scalar_select %p354, %s25, 3
        %s356 = smul.addr %s353, 4
        %s357 = sadd.s32 %s355, %s356
        %s358 = smul.addr %s357, 8
        %s359 = scalar_lea.vmem %s0, %s358
        %p360 = scmp.lt.s32.totalorder %s24, 1
        %s361 = scalar_select %p360, %s24, 1
        %p362 = scmp.lt.s32.totalorder %s25, 3
        %s363 = scalar_select %p362, %s25, 3
        %s364 = smul.addr %s361, 4
        %s365 = sadd.s32 %s363, %s364
        %s366 = scalar_lea.vmem %s1, %s365
        %p367 = scmp.lt.s32.totalorder %s24, 1
        %s368 = scalar_select %p367, %s24, 1
        %s369 = scalar_lea.vmem %s8, %s368
        %p370 = scmp.eq.s32.totalorder %s25, 0
        // Predicated region
        $region57: #{regression_head.1} parent=51 // pred_check
          %p371 = pneg %p370
        $region58: #{regression_head.1} parent=51 // pred_check_branch
          %373 = sbr.rel (%p371) target = $region60
        $region59: #{regression_head.1} parent=51 // pred_region
          %374 = vst [vmem:[#allocation2] sm:$0xff] 0.0
        $region60: #{regression_head.1} parent=51 // pred_fallthru
          _
        %v375 = vld [vmem:[#allocation2] sm:$0xff]
        %v376 = vld [vmem:[%s359] sm:$0xff]
        %v377 = vld [vmem:[%s366] sm:$0x1]
        %v379 = vperm.slane %v377, 0
        %v381 = vmul.f32 %v376, %v379
        %382 = vadd.xlane.f32.xlu0 %v381
        %v383 = vpop.xlane.xlu0 %382
        %v384 = vadd.f32 %v375, %v383
        %385 = vst [vmem:[#allocation2] sm:$0xff] %v384
        %p386 = scmp.eq.s32.totalorder %s25, 3
        // Predicated region
        $region61: #{regression_head.1} parent=51 // pred_check
          %p387 = pneg %p386
        $region62: #{regression_head.1} parent=51 // pred_check_branch
          %389 = sbr.rel (%p387) target = $region64
        $region63: #{regression_head.1} parent=51 // pred_region
          %v390 = vld [vmem:[#allocation2] sm:$0xff]
          %391 = vxpose.xlu0.b32.start [1/16] %v390, 128
          %392 = vxpose.xlu0.b32.cont [2/16] 0.0, 128
          %393 = vxpose.xlu0.b32.cont [3/16] 0.0, 128
          %394 = vxpose.xlu0.b32.cont [4/16] 0.0, 128
          %395 = vxpose.xlu0.b32.cont [5/16] 0.0, 128
          %396 = vxpose.xlu0.b32.cont [6/16] 0.0, 128
          %397 = vxpose.xlu0.b32.cont [7/16] 0.0, 128
          %398 = vxpose.xlu0.b32.cont [8/16] 0.0, 128
          %399 = vxpose.xlu0.b32.cont [9/16] 0.0, 128
          %400 = vxpose.xlu0.b32.cont [10/16] 0.0, 128
          %401 = vxpose.xlu0.b32.cont [11/16] 0.0, 128
          %402 = vxpose.xlu0.b32.cont [12/16] 0.0, 128
          %403 = vxpose.xlu0.b32.cont [13/16] 0.0, 128
          %404 = vxpose.xlu0.b32.cont [14/16] 0.0, 128
          %405 = vxpose.xlu0.b32.cont [15/16] 0.0, 128
          %406 = vxpose.xlu0.b32.end [16/16] 0.0, 128
          %v407 = vpop.trf.xlu0
          %v408 = vpop.trf.xlu0
          %v409 = vpop.trf.xlu0
          %v410 = vpop.trf.xlu0
          %v411 = vpop.trf.xlu0
          %v412 = vpop.trf.xlu0
          %v413 = vpop.trf.xlu0
          %v414 = vpop.trf.xlu0
          %v415 = vpop.trf.xlu0
          %v416 = vpop.trf.xlu0
          %v417 = vpop.trf.xlu0
          %v418 = vpop.trf.xlu0
          %v419 = vpop.trf.xlu0
          %v420 = vpop.trf.xlu0
          %v421 = vpop.trf.xlu0
          %v422 = vpop.trf.xlu0
          %v423 = vadd.f32 %v407, 0.0001
          %v424 = vrcp.pop %v423
          %v425 = vmul.f32 %v423, %v424
          %v426 = vsub.f32 1.0, %v425
          %v427 = vmul.f32 %v424, %v426
          %v428 = vadd.f32 %v424, %v427
          %vm429 = vweird.f32 %v423
          %vm430 = vweird.f32 %v424
          %vm431 = vmor %vm429, %vm430
          %v432 = vsel %vm431, %v424, %v428
          %v433 = vand.u32 2147483647, %v423
          %vm434 = vcmp.eq.f32.partialorder %v433, 8.507059e+37
          %v435 = vand.u32 %v423, 2147483648
          %v436 = vor.u32 1.1754944e-38, %v435
          %v437 = vsel %vm434, %v436, %v432
          %v438 = vmul.f32 1.0, %v437
          %440 = vset.pattern.permute.xlu0 6
          %441 = vperm.xlu0 %440, %v438
          %v442 = vpop.permute.xlu0 %441
          %v444 = vmul.f32 %v407, %v442
          %v445 = vld [vmem:[%s2] sm:$0xff]
          %v446 = vld [vmem:[%s2 + $0x8] sm:$0xff]
          %v447 = vld [vmem:[%s3] sm:$0x3]
          %v449 = vperm.slane %v447, 0
          %v450 = vperm.slane %v447, 1
          %vm453 = vcmask 64512
          %v455 = vsel %vm453, %v444, 0
          %457 = vmatpush.msra.mxu0 0.0
          %458 = vmatpush.msra.mxu0 0.0
          %459 = vmatpush.msra.mxu0 0.0
          %460 = vmatpush.msra.mxu0 0.0
          %461 = vmatpush.msra.mxu0 0.0
          %462 = vmatpush.msra.mxu0 0.0
          %463 = vmatpush.msra.mxu0 0.0
          %464 = vmatpush.msra.mxu0 0.0
          %465 = vmatpush.msra.mxu0 0.0
          %466 = vmatpush.msra.mxu0 0.0
          %467 = vmatpush.msra.mxu0 0.0
          %468 = vmatpush.msra.mxu0 0.0
          %469 = vmatpush.msra.mxu0 0.0
          %470 = vmatpush.msra.mxu0 0.0
          %471 = vmatpush.msra.mxu0 0.0
          %472 = vmatpush.msra.mxu0 %v445
          %473 = vmatmul.f32.gmra.mxu0 %v455
          %v474 = vpop.f32.mrf.mxu0
          %v475 = vadd.f32 %v449, %v474
          %476 = vdwg.mxu0
          %477 = vmatpush.msra.mxu0 0.0
          %478 = vmatpush.msra.mxu0 0.0
          %479 = vmatpush.msra.mxu0 0.0
          %480 = vmatpush.msra.mxu0 0.0
          %481 = vmatpush.msra.mxu0 0.0
          %482 = vmatpush.msra.mxu0 0.0
          %483 = vmatpush.msra.mxu0 0.0
          %484 = vmatpush.msra.mxu0 0.0
          %485 = vmatpush.msra.mxu0 0.0
          %486 = vmatpush.msra.mxu0 0.0
          %487 = vmatpush.msra.mxu0 0.0
          %488 = vmatpush.msra.mxu0 0.0
          %489 = vmatpush.msra.mxu0 0.0
          %490 = vmatpush.msra.mxu0 0.0
          %491 = vmatpush.msra.mxu0 0.0
          %492 = vmatpush.msra.mxu0 %v446
          %493 = vmatmul.f32.gmra.mxu0 %v455
          %v494 = vpop.f32.mrf.mxu0
          %v495 = vadd.f32 %v450, %v494
          %496 = vdwg.mxu0
          %v497 = vmax.f32 %v475, 0.0
          %v498 = vmax.f32 %v495, 0.0
          %v499 = vld [vmem:[%s4] sm:$0xff]
          %v500 = vld [vmem:[%s4 + $0x8] sm:$0xff]
          %v501 = vld [vmem:[%s4 + $0x10] sm:$0xff]
          %v502 = vld [vmem:[%s4 + $0x18] sm:$0xff]
          %v503 = vld [vmem:[%s4 + $0x20] sm:$0xff]
          %v504 = vld [vmem:[%s4 + $0x28] sm:$0xff]
          %v505 = vld [vmem:[%s4 + $0x30] sm:$0xff]
          %v506 = vld [vmem:[%s4 + $0x38] sm:$0xff]
          %v507 = vld [vmem:[%s4 + $0x40] sm:$0xff]
          %v508 = vld [vmem:[%s4 + $0x48] sm:$0xff]
          %v509 = vld [vmem:[%s4 + $0x50] sm:$0xff]
          %v510 = vld [vmem:[%s4 + $0x58] sm:$0xff]
          %v511 = vld [vmem:[%s4 + $0x60] sm:$0xff]
          %v512 = vld [vmem:[%s4 + $0x68] sm:$0xff]
          %v513 = vld [vmem:[%s4 + $0x70] sm:$0xff]
          %v514 = vld [vmem:[%s4 + $0x78] sm:$0xff]
          %v515 = vld [vmem:[%s4 + $0x80] sm:$0xff]
          %v516 = vld [vmem:[%s4 + $0x88] sm:$0xff]
          %v517 = vld [vmem:[%s4 + $0x90] sm:$0xff]
          %v518 = vld [vmem:[%s4 + $0x98] sm:$0xff]
          %v519 = vld [vmem:[%s4 + $0xa0] sm:$0xff]
          %v520 = vld [vmem:[%s4 + $0xa8] sm:$0xff]
          %v521 = vld [vmem:[%s4 + $0xb0] sm:$0xff]
          %v522 = vld [vmem:[%s4 + $0xb8] sm:$0xff]
          %v523 = vld [vmem:[%s4 + $0xc0] sm:$0xff]
          %v524 = vld [vmem:[%s4 + $0xc8] sm:$0xff]
          %v525 = vld [vmem:[%s4 + $0xd0] sm:$0xff]
          %v526 = vld [vmem:[%s4 + $0xd8] sm:$0xff]
          %v527 = vld [vmem:[%s4 + $0xe0] sm:$0xff]
          %v528 = vld [vmem:[%s4 + $0xe8] sm:$0xff]
          %v529 = vld [vmem:[%s4 + $0xf0] sm:$0xff]
          %v530 = vld [vmem:[%s4 + $0xf8] sm:$0xff]
          %v531 = vld [vmem:[%s5] sm:$0x1]
          %532 = vmatpush.msra.mxu0 %v514
          %533 = vmatpush.msra.mxu0 %v513
          %534 = vmatpush.msra.mxu0 %v512
          %535 = vmatpush.msra.mxu0 %v511
          %536 = vmatpush.msra.mxu0 %v510
          %537 = vmatpush.msra.mxu0 %v509
          %538 = vmatpush.msra.mxu0 %v508
          %539 = vmatpush.msra.mxu0 %v507
          %540 = vmatpush.msra.mxu0 %v506
          %541 = vmatpush.msra.mxu0 %v505
          %542 = vmatpush.msra.mxu0 %v504
          %543 = vmatpush.msra.mxu0 %v503
          %544 = vmatpush.msra.mxu0 %v502
          %545 = vmatpush.msra.mxu0 %v501
          %546 = vmatpush.msra.mxu0 %v500
          %547 = vmatpush.msra.mxu0 %v499
          %548 = vmatmul.f32.gmra.mxu0 %v497
          %v549 = vpop.f32.mrf.mxu0
          %v550 = vadd.f32 %v531, %v549
          %551 = vdwg.mxu0
          %552 = vmatpush.msra.mxu0 %v530
          %553 = vmatpush.msra.mxu0 %v529
          %554 = vmatpush.msra.mxu0 %v528
          %555 = vmatpush.msra.mxu0 %v527
          %556 = vmatpush.msra.mxu0 %v526
          %557 = vmatpush.msra.mxu0 %v525
          %558 = vmatpush.msra.mxu0 %v524
          %559 = vmatpush.msra.mxu0 %v523
          %560 = vmatpush.msra.mxu0 %v522
          %561 = vmatpush.msra.mxu0 %v521
          %562 = vmatpush.msra.mxu0 %v520
          %563 = vmatpush.msra.mxu0 %v519
          %564 = vmatpush.msra.mxu0 %v518
          %565 = vmatpush.msra.mxu0 %v517
          %566 = vmatpush.msra.mxu0 %v516
          %567 = vmatpush.msra.mxu0 %v515
          %568 = vmatmul.f32.gmra.mxu0 %v498
          %v569 = vpop.f32.mrf.mxu0
          %v570 = vadd.f32 %v550, %v569
          %571 = vdwg.mxu0
          %v572 = vmax.f32 %v570, 0.0
          %v573 = vld [vmem:[#allocation3] sm:$0xff]
          %v574 = vld [vmem:[#allocation3 + $0x8] sm:$0xff]
          %v575 = vld [vmem:[#allocation3 + $0x10] sm:$0xff]
          %v576 = vld [vmem:[#allocation3 + $0x18] sm:$0xff]
          %v577 = vld [vmem:[#allocation3 + $0x20] sm:$0xff]
          %v578 = vld [vmem:[#allocation3 + $0x28] sm:$0xff]
          %v579 = vld [vmem:[#allocation3 + $0x30] sm:$0xff]
          %v580 = vld [vmem:[#allocation3 + $0x38] sm:$0xff]
          %v581 = vld [vmem:[#allocation3 + $0x40] sm:$0xff]
          %v582 = vld [vmem:[#allocation3 + $0x48] sm:$0xff]
          %v583 = vld [vmem:[#allocation3 + $0x50] sm:$0xff]
          %v584 = vld [vmem:[#allocation3 + $0x58] sm:$0xff]
          %v585 = vld [vmem:[#allocation3 + $0x60] sm:$0xff]
          %v586 = vld [vmem:[#allocation3 + $0x68] sm:$0xff]
          %v587 = vld [vmem:[#allocation3 + $0x70] sm:$0xff]
          %v588 = vld [vmem:[#allocation3 + $0x78] sm:$0xff]
          %v589 = vld [vmem:[%s7] sm:$0x1]
          %590 = vmatpush.msra.mxu0 %v588
          %591 = vmatpush.msra.mxu0 %v587
          %592 = vmatpush.msra.mxu0 %v586
          %593 = vmatpush.msra.mxu0 %v585
          %594 = vmatpush.msra.mxu0 %v584
          %595 = vmatpush.msra.mxu0 %v583
          %596 = vmatpush.msra.mxu0 %v582
          %597 = vmatpush.msra.mxu0 %v581
          %598 = vmatpush.msra.mxu0 %v580
          %599 = vmatpush.msra.mxu0 %v579
          %600 = vmatpush.msra.mxu0 %v578
          %601 = vmatpush.msra.mxu0 %v577
          %602 = vmatpush.msra.mxu0 %v576
          %603 = vmatpush.msra.mxu0 %v575
          %604 = vmatpush.msra.mxu0 %v574
          %605 = vmatpush.msra.mxu0 %v573
          %606 = vmatmul.f32.gmra.mxu0 %v572
          %v607 = vpop.f32.mrf.mxu0
          %v608 = vadd.f32 %v589, %v607
          %609 = vdwg.mxu0
          %vm610 = vcmask 57344
          %611 = vst.msk [vmem:[%s369] sm:$0x1] %vm610, %v608
        $region64: #{regression_head.1} parent=51 // pred_fallthru
          _
        %p612 = scmp.lt.s32.totalorder %s24, 1
        %s613 = scalar_select %p612, %s24, 1
        %s614 = scalar_lea.vmem %s8, %s613
        // Predicated region
        $region65: #{regression_head.1} parent=51 // pred_check
          %p615 = pneg %p232
        $region66: #{regression_head.1} parent=51 // pred_check_branch
          %617 = sbr.rel (%p615) target = $region68
        $region67: #{regression_head.1} parent=51 // pred_region
          _
        $region68: #{regression_head.1} parent=51 // pred_fallthru
          _
      $region52: #{regression_head.1} parent=5 // pred_fallthru
        _
      %p618 = scmp.le.s32.totalorder 2, %s15
      // Predicated region
      $region69: #{regression_head.1} parent=5 // pred_check
        %p619 = pneg %p618
      $region70: #{regression_head.1} parent=5 // pred_check_branch
        %621 = sbr.rel (%p619) target = $region72
      $region71: #{regression_head.1} parent=5 // pred_region
        %s622 = ssub.s32 %s15, 2
        // Predicated region
        $region73: #{regression_head.1} parent=71 // pred_check
          %p623 = pneg %p238
        $region74: #{regression_head.1} parent=71 // pred_check_branch
          %625 = sbr.rel (%p623) target = $region76
        $region75: #{regression_head.1} parent=71 // pred_region
          %p626 = scmp.lt.s32.totalorder %s26, 1
          %s627 = scalar_select %p626, %s26, 1
          %s628 = scalar_lea.vmem %s8, %s627
        $region76: #{regression_head.1} parent=71 // pred_fallthru
          _
      $region72: #{regression_head.1} parent=5 // pred_fallthru
        _
    $region6: #{regression_head.1} parent=1 // loop_footer
      %s19 = sadd.s32 1, %s15
    $region7: #{regression_head.1} parent=1 // loop_footer_branch
      %14 = sbr.rel target = $region3
    $region8: #{regression_head.1} parent=1 // loop_exit
      _
    %629 = vsyncpa [#allocation4], 1
    %s630 = scalar_lea.sflag [#allocation4], 1
    %631 = vsyncpa %s630, 1

</llo_original>
